<compile_context>
chip_gen: v7x
topology: tpu7x:2x2x1
jax: 0.10.0
libtpu: 0.0.40
codegen_flags: <defaults>
</compile_context>

<pallas_src>
import functools

import jax
import jax.numpy as jnp
from jax.experimental import pallas as pl
from jax.experimental.pallas import tpu as pltpu


def _elbo_ce_kernel(*refs, n_total, tile_n, num_samples):
    """Per-tile summed cross-entropy over S MC samples.

    refs = (tgt_ref, logit_ref_0, ..., logit_ref_{S-1}, out_ref)
      tgt_ref:    VMEM (tile_n, 1) int32
      logit_ref_s VMEM (tile_n, C) float32/bfloat16
      out_ref:    VMEM (1, 8, 128) float32   (per-tile partial, broadcast into the block)
    """
    tgt_ref = refs[0]
    logit_refs = refs[1:1 + num_samples]
    out_ref = refs[1 + num_samples]

    tgt = tgt_ref[...]                                            # (tN, 1) int32
    tN = tile_n
    C = logit_refs[0].shape[-1]

    # One-hot target mask: built ONCE per tile, reused across all S samples.
    class_ids = jax.lax.broadcasted_iota(jnp.int32, (tN, C), 1)
    onehot = class_ids == tgt                                      # (tN, C) bool

    # Rows beyond the true batch size (padded last tile) contribute 0.
    row_ids = jax.lax.broadcasted_iota(jnp.int32, (tN, 1), 0) + pl.program_id(0) * tile_n
    valid = row_ids < n_total                                      # (tN, 1) bool

    ce_acc = jnp.zeros((tN, 1), jnp.float32)
    for lref in logit_refs:                                        # unrolled: S is small & static
        logits = lref[...].astype(jnp.float32)                     # per-tile upcast (bf16-friendly)
        m = jnp.max(logits, axis=-1, keepdims=True)                # (tN, 1)
        lse = jnp.log(jnp.sum(jnp.exp(logits - m), axis=-1, keepdims=True)) + m
        tgt_logit = jnp.sum(jnp.where(onehot, logits, 0.0), axis=-1, keepdims=True)
        ce_acc = ce_acc + (lse - tgt_logit)                        # per-example NLL, summed over S

    partial = jnp.sum(jnp.where(valid, ce_acc, 0.0))               # scalar partial for this tile
    out_ref[...] = jnp.broadcast_to(partial, out_ref.shape).astype(jnp.float32)


def classification_elbo_loss(model_preds_s, targets, log_prior, log_va_poster, batch_num,
                             tile_n=None):
    """JAX/Pallas equivalent of ClassificationELBOLoss.forward.

    model_preds_s: list of S arrays, each (N, C) logits (f32 or bf16, native dtype).
    targets:       (N,) int class labels in [0, C).
    log_prior, log_va_poster: scalars.
    """
    S = len(model_preds_s)
    N, C = model_preds_s[0].shape
    itemsize = jnp.dtype(model_preds_s[0].dtype).itemsize
    align = 16 if itemsize < 4 else 8                              # bf16 min sublane tile is 16

    if tile_n is None:
        # Keep the S double-buffered logit tiles around ~6 MiB total -> safe on every
        # generation's default scoped-VMEM limit (v5e 16 MiB, v6e/v7x 32 MiB).
        budget_bytes = 6 * 1024 * 1024
        rows = budget_bytes // max(1, 2 * S * C * itemsize)
        tile_n = max(align, (rows // align) * align)
    tile_n = int(min(tile_n, N))
    if tile_n < N:                                                 # tiled path needs aligned rows
        tile_n = max(align, (tile_n // align) * align)

    num_tiles = pl.cdiv(N, tile_n)
    tgt2d = targets.astype(jnp.int32).reshape(N, 1)

    kernel = functools.partial(_elbo_ce_kernel, n_total=N, tile_n=tile_n, num_samples=S)

    logit_specs = [pl.BlockSpec((tile_n, C), lambda i: (i, 0)) for _ in range(S)]
    partials = pl.pallas_call(
        kernel,
        out_shape=jax.ShapeDtypeStruct((num_tiles, 8, 128), jnp.float32),
        grid=(num_tiles,),
        in_specs=[pl.BlockSpec((tile_n, 1), lambda i: (i, 0))] + logit_specs,
        out_specs=pl.BlockSpec((1, 8, 128), lambda i: (i, 0, 0)),
        compiler_params=pltpu.CompilerParams(dimension_semantics=("parallel",)),
    )(tgt2d, *model_preds_s)

    # Tiny final reduction + KL term in plain JAX (keeps the grid axis fully parallel).
    neg_log_like = jnp.sum(partials[:, 0, 0])
    kl = (jnp.asarray(log_va_poster, jnp.float32)
          - jnp.asarray(log_prior, jnp.float32)) / jnp.float32(batch_num)
    return kl + neg_log_like / jnp.float32(S)


def _reference(model_preds_s, targets, log_prior, log_va_poster, batch_num):
    N = targets.shape[0]
    ref_ce = jnp.float32(0.0)
    for p in model_preds_s:
        p32 = p.astype(jnp.float32)
        lse = jax.nn.logsumexp(p32, axis=-1)
        ref_ce = ref_ce + jnp.sum(lse - p32[jnp.arange(N), targets])
    return (log_va_poster - log_prior) / batch_num + ref_ce / len(model_preds_s)


if __name__ == "__main__":
    key = jax.random.PRNGKey(0)

    # --- small demo matching the module's forward: S MC samples, batch N, C classes ---
    S, N, C = 3, 8, 32
    batch_num = 10
    ks = jax.random.split(key, S + 3)
    model_preds_s = [jax.random.normal(ks[i], (N, C), dtype=jnp.float32) for i in range(S)]
    targets = jax.random.randint(ks[S], (N,), 0, C, dtype=jnp.int32)
    log_prior = jax.random.normal(ks[S + 1], ()) * 10.0 - 50.0
    log_va_poster = jax.random.normal(ks[S + 2], ()) * 10.0 - 40.0

    loss = classification_elbo_loss(model_preds_s, targets, log_prior, log_va_poster, batch_num)
    loss = jax.block_until_ready(loss)
    ref = _reference(model_preds_s, targets, log_prior, log_va_poster, batch_num)
    assert jnp.allclose(loss, ref, rtol=1e-4, atol=1e-3), (loss, ref)

    # --- second check: multi-tile grid + padded last tile (N not divisible by tile_n) ---
    S2, N2, C2 = 2, 200, 32
    ks2 = jax.random.split(jax.random.PRNGKey(1), S2 + 1)
    preds2 = [jax.random.normal(ks2[i], (N2, C2), dtype=jnp.float32) for i in range(S2)]
    tgt2 = jax.random.randint(ks2[S2], (N2,), 0, C2, dtype=jnp.int32)
    loss2 = classification_elbo_loss(preds2, tgt2, log_prior, log_va_poster, batch_num, tile_n=64)
    loss2 = jax.block_until_ready(loss2)
    ref2 = _reference(preds2, tgt2, log_prior, log_va_poster, batch_num)
    assert jnp.allclose(loss2, ref2, rtol=1e-4, atol=1e-3), (loss2, ref2)

    print("KERNEL_OK")
</pallas_src>

<mosaic_0001>
module attributes {stable_mosaic.version = 11 : i64} {
  func.func @_elbo_ce_kernel(%arg0: i32, %arg1: memref<8x1xi32, #tpu.memory_space<vmem>>, %arg2: memref<8x32xf32, #tpu.memory_space<vmem>>, %arg3: memref<8x32xf32, #tpu.memory_space<vmem>>, %arg4: memref<8x32xf32, #tpu.memory_space<vmem>>, %arg5: memref<1x8x128xf32, #tpu.memory_space<vmem>>) attributes {dimension_semantics = [#tpu.dimension_semantics<parallel>], iteration_bounds = array<i64: 1>, scalar_prefetch = 0 : i64, scratch_operands = 0 : i64, tpu.core_type = #tpu.core_type<tc>, window_params = [{transform_indices = @transform_0, window_bounds = array<i64: 8, 1>}, {transform_indices = @transform_1, window_bounds = array<i64: 8, 32>}, {transform_indices = @transform_2, window_bounds = array<i64: 8, 32>}, {transform_indices = @transform_3, window_bounds = array<i64: 8, 32>}, {transform_indices = @transform_4, window_bounds = array<i64: 1, 8, 128>}]} {
    %c0 = arith.constant 0 : index
    %c0_0 = arith.constant 0 : index
    %0 = vector.load %arg1[%c0, %c0_0] : memref<8x1xi32, #tpu.memory_space<vmem>>, vector<8x1xi32>
    %1 = tpu.iota {dimensions = array<i32: 1>} : vector<8x32xi32>
    %2 = vector.broadcast %0 : vector<8x1xi32> to vector<8x32xi32>
    %3 = arith.cmpi eq, %1, %2 : vector<8x32xi32>
    %4 = tpu.iota {dimensions = array<i32: 0>} : vector<8x1xi32>
    %c8_i32 = arith.constant 8 : i32
    %5 = arith.muli %arg0, %c8_i32 : i32
    %6 = vector.broadcast %5 : i32 to vector<8x1xi32>
    %7 = arith.addi %4, %6 : vector<8x1xi32>
    %c8_i32_1 = arith.constant 8 : i32
    %8 = vector.broadcast %c8_i32_1 : i32 to vector<8x1xi32>
    %9 = arith.cmpi slt, %7, %8 : vector<8x1xi32>
    %cst = arith.constant 0.000000e+00 : f32
    %10 = vector.broadcast %cst : f32 to vector<8x1xf32>
    %c0_2 = arith.constant 0 : index
    %c0_3 = arith.constant 0 : index
    %11 = vector.load %arg2[%c0_2, %c0_3] : memref<8x32xf32, #tpu.memory_space<vmem>>, vector<8x32xf32>
    %cst_4 = arith.constant dense<0xFF800000> : vector<8xf32>
    %12 = vector.multi_reduction <maximumf>, %11, %cst_4 [1] : vector<8x32xf32> to vector<8xf32>
    %13 = vector.shape_cast %12 : vector<8xf32> to vector<8x1xf32>
    %14 = vector.broadcast %13 : vector<8x1xf32> to vector<8x32xf32>
    %15 = arith.subf %11, %14 : vector<8x32xf32>
    %16 = math.exp %15 : vector<8x32xf32>
    %cst_5 = arith.constant dense<0.000000e+00> : vector<8xf32>
    %17 = vector.multi_reduction <add>, %16, %cst_5 [1] : vector<8x32xf32> to vector<8xf32>
    %18 = vector.shape_cast %17 : vector<8xf32> to vector<8x1xf32>
    %19 = math.log %18 : vector<8x1xf32>
    %20 = arith.addf %19, %13 : vector<8x1xf32>
    %cst_6 = arith.constant 0.000000e+00 : f32
    %21 = vector.broadcast %cst_6 : f32 to vector<8x32xf32>
    %22 = arith.select %3, %11, %21 : vector<8x32xi1>, vector<8x32xf32>
    %cst_7 = arith.constant dense<0.000000e+00> : vector<8xf32>
    %23 = vector.multi_reduction <add>, %22, %cst_7 [1] : vector<8x32xf32> to vector<8xf32>
    %24 = vector.shape_cast %23 : vector<8xf32> to vector<8x1xf32>
    %25 = arith.subf %20, %24 : vector<8x1xf32>
    %26 = arith.addf %10, %25 : vector<8x1xf32>
    %c0_8 = arith.constant 0 : index
    %c0_9 = arith.constant 0 : index
    %27 = vector.load %arg3[%c0_8, %c0_9] : memref<8x32xf32, #tpu.memory_space<vmem>>, vector<8x32xf32>
    %cst_10 = arith.constant dense<0xFF800000> : vector<8xf32>
    %28 = vector.multi_reduction <maximumf>, %27, %cst_10 [1] : vector<8x32xf32> to vector<8xf32>
    %29 = vector.shape_cast %28 : vector<8xf32> to vector<8x1xf32>
    %30 = vector.broadcast %29 : vector<8x1xf32> to vector<8x32xf32>
    %31 = arith.subf %27, %30 : vector<8x32xf32>
    %32 = math.exp %31 : vector<8x32xf32>
    %cst_11 = arith.constant dense<0.000000e+00> : vector<8xf32>
    %33 = vector.multi_reduction <add>, %32, %cst_11 [1] : vector<8x32xf32> to vector<8xf32>
    %34 = vector.shape_cast %33 : vector<8xf32> to vector<8x1xf32>
    %35 = math.log %34 : vector<8x1xf32>
    %36 = arith.addf %35, %29 : vector<8x1xf32>
    %cst_12 = arith.constant 0.000000e+00 : f32
    %37 = vector.broadcast %cst_12 : f32 to vector<8x32xf32>
    %38 = arith.select %3, %27, %37 : vector<8x32xi1>, vector<8x32xf32>
    %cst_13 = arith.constant dense<0.000000e+00> : vector<8xf32>
    %39 = vector.multi_reduction <add>, %38, %cst_13 [1] : vector<8x32xf32> to vector<8xf32>
    %40 = vector.shape_cast %39 : vector<8xf32> to vector<8x1xf32>
    %41 = arith.subf %36, %40 : vector<8x1xf32>
    %42 = arith.addf %26, %41 : vector<8x1xf32>
    %c0_14 = arith.constant 0 : index
    %c0_15 = arith.constant 0 : index
    %43 = vector.load %arg4[%c0_14, %c0_15] : memref<8x32xf32, #tpu.memory_space<vmem>>, vector<8x32xf32>
    %cst_16 = arith.constant dense<0xFF800000> : vector<8xf32>
    %44 = vector.multi_reduction <maximumf>, %43, %cst_16 [1] : vector<8x32xf32> to vector<8xf32>
    %45 = vector.shape_cast %44 : vector<8xf32> to vector<8x1xf32>
    %46 = vector.broadcast %45 : vector<8x1xf32> to vector<8x32xf32>
    %47 = arith.subf %43, %46 : vector<8x32xf32>
    %48 = math.exp %47 : vector<8x32xf32>
    %cst_17 = arith.constant dense<0.000000e+00> : vector<8xf32>
    %49 = vector.multi_reduction <add>, %48, %cst_17 [1] : vector<8x32xf32> to vector<8xf32>
    %50 = vector.shape_cast %49 : vector<8xf32> to vector<8x1xf32>
    %51 = math.log %50 : vector<8x1xf32>
    %52 = arith.addf %51, %45 : vector<8x1xf32>
    %cst_18 = arith.constant 0.000000e+00 : f32
    %53 = vector.broadcast %cst_18 : f32 to vector<8x32xf32>
    %54 = arith.select %3, %43, %53 : vector<8x32xi1>, vector<8x32xf32>
    %cst_19 = arith.constant dense<0.000000e+00> : vector<8xf32>
    %55 = vector.multi_reduction <add>, %54, %cst_19 [1] : vector<8x32xf32> to vector<8xf32>
    %56 = vector.shape_cast %55 : vector<8xf32> to vector<8x1xf32>
    %57 = arith.subf %52, %56 : vector<8x1xf32>
    %58 = arith.addf %42, %57 : vector<8x1xf32>
    %cst_20 = arith.constant 0.000000e+00 : f32
    %59 = vector.broadcast %cst_20 : f32 to vector<8x1xf32>
    %60 = arith.select %9, %58, %59 : vector<8x1xi1>, vector<8x1xf32>
    %61 = vector.shape_cast %60 : vector<8x1xf32> to vector<1x8x1xf32>
    %cst_21 = arith.constant dense<0.000000e+00> : vector<1xf32>
    %62 = vector.multi_reduction <add>, %61, %cst_21 [1, 2] : vector<1x8x1xf32> to vector<1xf32>
    %63 = vector.shape_cast %62 : vector<1xf32> to vector<1x1x1xf32>
    %64 = vector.extract %63[0, 0, 0] : f32 from vector<1x1x1xf32>
    %65 = vector.broadcast %64 : f32 to vector<1x8x128xf32>
    %c0_22 = arith.constant 0 : index
    %c0_23 = arith.constant 0 : index
    %c0_24 = arith.constant 0 : index
    %66 = vector.load %arg5[%c0_22, %c0_23, %c0_24] : memref<1x8x128xf32, #tpu.memory_space<vmem>>, vector<1x8x128xf32>
    tpu.vector_store %arg5[%c0_22, %c0_23, %c0_24], %65 {strides = array<i32>} : memref<1x8x128xf32, #tpu.memory_space<vmem>>, vector<1x8x128xf32>,
    return
  }
  func.func @transform_0(%arg0: i32) -> (i32, i32) {
    %c0_i32 = arith.constant 0 : i32
    %c0_i32_0 = arith.constant 0 : i32
    return %arg0, %c0_i32 : i32, i32
  }
  func.func @transform_1(%arg0: i32) -> (i32, i32) {
    %c0_i32 = arith.constant 0 : i32
    %c0_i32_0 = arith.constant 0 : i32
    return %arg0, %c0_i32 : i32, i32
  }
  func.func @transform_2(%arg0: i32) -> (i32, i32) {
    %c0_i32 = arith.constant 0 : i32
    %c0_i32_0 = arith.constant 0 : i32
    return %arg0, %c0_i32 : i32, i32
  }
  func.func @transform_3(%arg0: i32) -> (i32, i32) {
    %c0_i32 = arith.constant 0 : i32
    %c0_i32_0 = arith.constant 0 : i32
    return %arg0, %c0_i32 : i32, i32
  }
  func.func @transform_4(%arg0: i32) -> (i32, i32, i32) {
    %c0_i32 = arith.constant 0 : i32
    %c0_i32_0 = arith.constant 0 : i32
    %c0_i32_1 = arith.constant 0 : i32
    return %arg0, %c0_i32, %c0_i32_0 : i32, i32, i32
  }
}

</mosaic_0001>

<llo_original>
// kernel: tpu_custom_call.1
$region0: #{tpu_custom_call.1}
  #allocation0 [shape = 'u32[]', space=smem, size = 0x4, offset = 0x4, fixed_abs, tag = 'smem constant byte address 0x4 - core index']
  #allocation1 [shape = 'u32[144,128]{1,0:T(1,128)}', space=vmem, size = 0x12000, scoped, tag = 'internal scratch']
  %s0 = inlined_call_operand.vmem [shape: s32[8,1], index: 0, kind: input, shape index: {}]
  %s1 = inlined_call_operand.vmem [shape: f32[8,32], index: 1, kind: input, shape index: {}]
  %s2 = inlined_call_operand.vmem [shape: f32[8,32], index: 2, kind: input, shape index: {}]
  %s3 = inlined_call_operand.hbm [shape: f32[8,32], index: 3, kind: input, shape index: {}]
  %s4 = inlined_call_operand.hbm [shape: f32[1,8,128], index: 4, kind: output, shape index: {}]
  %s5 = sld [smem:[#allocation0]]
  $region30: #{tpu_custom_call.1} parent=0
    _
  %s7 = ssub.s32 1, %s5
  %s8 = scalar_select 0, %s7, %s5
  $region1: #{tpu_custom_call.1} parent=0
    #allocation2 [shape = 'u8[4096]{0}', space=vmem, size = 0x1000, scoped, tag = 'input window, operand 3, single buffered']
    #allocation3 [shape = 's32[1]{0}', space=sflag, size = 0x4, scoped, tag = 'scoped memory for tpu_custom_call.1']
    #allocation4 [shape = 's32[1]{0}', space=sflag, size = 0x4, scoped, tag = 'scoped memory for tpu_custom_call.1']
    #allocation5 [shape = 'u8[4096]{0}', space=vmem, size = 0x1000, scoped, tag = 'output window, operand 0, single buffered']
    %9 = vsyncpa [#allocation3], 0
    %10 = vsyncpa [#allocation4], 0
    // Predicated region
    $region2: #{tpu_custom_call.1} parent=1 // pred_check
      _
    $region3: #{tpu_custom_call.1} parent=1 // pred_check_branch
      %12 = sbr.rel (0) target = $region5
    $region4: #{tpu_custom_call.1} parent=1 // pred_region
      _
    $region5: #{tpu_custom_call.1} parent=1 // pred_fallthru
      _
    // Predicated region
    $region6: #{tpu_custom_call.1} parent=1 // pred_check
      _
    $region7: #{tpu_custom_call.1} parent=1 // pred_check_branch
      %14 = sbr.rel (0) target = $region9
    $region8: #{tpu_custom_call.1} parent=1 // pred_region
      _
    $region9: #{tpu_custom_call.1} parent=1 // pred_fallthru
      _
    // Predicated region
    $region10: #{tpu_custom_call.1} parent=1 // pred_check
      _
    $region11: #{tpu_custom_call.1} parent=1 // pred_check_branch
      %16 = sbr.rel (0) target = $region13
    $region12: #{tpu_custom_call.1} parent=1 // pred_region
      _
    $region13: #{tpu_custom_call.1} parent=1 // pred_fallthru
      _
    // Predicated region
    $region14: #{tpu_custom_call.1} parent=1 // pred_check
      _
    $region15: #{tpu_custom_call.1} parent=1 // pred_check_branch
      %18 = sbr.rel (0) target = $region17
    $region16: #{tpu_custom_call.1} parent=1 // pred_region
      %s20 = ssub.s32 128, 128
      %21 = vsyncadd [#allocation3], %s20
      %s23 = sshll.u32 [#allocation2], 4
      %s24 = int_to_ptr.vmem [resolvable:$true] %s23
      %26 = dma.hbm_to_vmem [thread:$0]  %s3, 128, %s24, [#allocation3]
    $region17: #{tpu_custom_call.1} parent=1 // pred_fallthru
      _
    // Predicated region
    $region18: #{tpu_custom_call.1} parent=1 // pred_check
      _
    $region19: #{tpu_custom_call.1} parent=1 // pred_check_branch
      %28 = sbr.rel (0) target = $region21
    $region20: #{tpu_custom_call.1} parent=1 // pred_region
      %29 = dma.done [#allocation3], 128
    $region21: #{tpu_custom_call.1} parent=1 // pred_fallthru
      _
    %v30 = vld [vmem:[%s0] sm:$0xff]
    %v31 = vlaneseq
    %v32 = vand.u32 %v31, 127
    %33 = vset.pattern.permute.xlu0 0
    %34 = vperm.xlu0 %33, %v30
    %v35 = vpop.permute.xlu0 %34
    %vm36 = vcmp.eq.s32.totalorder %v32, %v35
    %v37 = vlaneseq
    %v38 = vshrl.u32 %v37, 7
    %s39 = smul.u32 0, 8
    %v40 = vstv %s39
    %v41 = vadd.s32 %v38, %v40
    %vm42 = vcmp.lt.s32.totalorder %v41, 8
    %v43 = vld [vmem:[%s1] sm:$0xff]
    %vm44 = vcmask 261120
    %v45 = vsel %vm44, %v43, -inf
    %46 = vmax.xlane.f32.xlu0 %v45
    %v47 = vpop.xlane.xlu0 %46
    %v48 = vsub.f32 %v43, %v47
    %v49 = vmul.f32 %v48, 1.442695
    %v50 = vpow.pop %v49
    %v51 = vsel %vm44, %v50, 0.0
    %52 = vadd.xlane.f32.xlu0 %v51
    %v53 = vpop.xlane.xlu0 %52
    %v54 = vlog2.pop %v53
    %v55 = vmul.f32 %v54, 0.6931472
    %v56 = vadd.f32 %v55, %v47
    %v57 = vsel %vm36, %v43, 0.0
    %v58 = vsel %vm44, %v57, 0.0
    %59 = vadd.xlane.f32.xlu0 %v58
    %v60 = vpop.xlane.xlu0 %59
    %v61 = vsub.f32 %v56, %v60
    %v62 = vadd.f32 %v61, 0.0
    %v63 = vld [vmem:[%s2] sm:$0xff]
    %v64 = vsel %vm44, %v63, -inf
    %65 = vmax.xlane.f32.xlu0 %v64
    %v66 = vpop.xlane.xlu0 %65
    %v67 = vsub.f32 %v63, %v66
    %v68 = vmul.f32 %v67, 1.442695
    %v69 = vpow.pop %v68
    %v70 = vsel %vm44, %v69, 0.0
    %71 = vadd.xlane.f32.xlu0 %v70
    %v72 = vpop.xlane.xlu0 %71
    %v73 = vlog2.pop %v72
    %v74 = vmul.f32 %v73, 0.6931472
    %v75 = vadd.f32 %v74, %v66
    %v76 = vsel %vm36, %v63, 0.0
    %v77 = vsel %vm44, %v76, 0.0
    %78 = vadd.xlane.f32.xlu0 %v77
    %v79 = vpop.xlane.xlu0 %78
    %v80 = vsub.f32 %v75, %v79
    %v81 = vadd.f32 %v62, %v80
    %v82 = vld [vmem:[#allocation2] sm:$0xff]
    %v83 = vsel %vm44, %v82, -inf
    %84 = vmax.xlane.f32.xlu0 %v83
    %v85 = vpop.xlane.xlu0 %84
    %v86 = vsub.f32 %v82, %v85
    %v87 = vmul.f32 %v86, 1.442695
    %v88 = vpow.pop %v87
    %v89 = vsel %vm44, %v88, 0.0
    %90 = vadd.xlane.f32.xlu0 %v89
    %v91 = vpop.xlane.xlu0 %90
    %v92 = vlog2.pop %v91
    %v93 = vmul.f32 %v92, 0.6931472
    %v94 = vadd.f32 %v93, %v85
    %v95 = vsel %vm36, %v82, 0.0
    %v96 = vsel %vm44, %v95, 0.0
    %97 = vadd.xlane.f32.xlu0 %v96
    %v98 = vpop.xlane.xlu0 %97
    %v99 = vsub.f32 %v94, %v98
    %v100 = vadd.f32 %v81, %v99
    %v101 = vsel %vm42, %v100, 0.0
    %vm102 = vcmask 7168
    %v103 = vsel %vm102, %v101, 0.0
    %104 = vadd.xlane.f32.xlu0 %v103
    %v105 = vpop.xlane.xlu0 %104
    %v106 = vrot.slane %v105, 4
    %v107 = vadd.f32 %v105, %v106
    %v108 = vrot.slane %v107, 2
    %v109 = vadd.f32 %v107, %v108
    %v110 = vrot.slane %v109, 1
    %v111 = vadd.f32 %v109, %v110
    %s112 = vtos %v111
    %v113 = vstv %s112
    %114 = vst [vmem:[#allocation5] sm:$0xff] %v113
    // Predicated region
    $region22: #{tpu_custom_call.1} parent=1 // pred_check
      _
    $region23: #{tpu_custom_call.1} parent=1 // pred_check_branch
      %116 = sbr.rel (0) target = $region25
    $region24: #{tpu_custom_call.1} parent=1 // pred_region
      %s118 = ssub.s32 128, 128
      %119 = vsyncadd [#allocation4], %s118
      %s121 = sshll.u32 [#allocation5], 4
      %s122 = int_to_ptr.vmem [resolvable:$true] %s121
      %124 = dma.vmem_to_hbm [thread:$0]  %s122, 128, %s4, [#allocation4]
    $region25: #{tpu_custom_call.1} parent=1 // pred_fallthru
      _
    // Predicated region
    $region26: #{tpu_custom_call.1} parent=1 // pred_check
      _
    $region27: #{tpu_custom_call.1} parent=1 // pred_check_branch
      %126 = sbr.rel (0) target = $region29
    $region28: #{tpu_custom_call.1} parent=1 // pred_region
      %127 = dma.done [#allocation4], 128
    $region29: #{tpu_custom_call.1} parent=1 // pred_fallthru
      _
    %128 = vsyncpa [#allocation3], 1
    %129 = vsyncpa [#allocation4], 1

</llo_original>
